<compile_context>
chip_gen: v5e
topology: v5e:2x2
jax: 0.10.0
libtpu: 0.0.40
codegen_flags: <defaults>
</compile_context>

<pallas_src>
import functools

import jax
import jax.numpy as jnp
from jax.experimental import pallas as pl
from jax.experimental.pallas import tpu as pltpu


def bottleneck_kernel(x_ref, w1_ref, w2_ref, w3_ref, b_ref, m_ref, o_ref, *, W):
    """x_ref: (Cin, Lb) f32      w1: (P, Cin) bf16   w2: (P, 9P) bf16
       w3: (Cout, P) bf16        b_ref: (2P + Cout, 1) f32
       m_ref: (9, Lb) f32 0/1    o_ref: (Cout, Lb) f32"""
    P = w1_ref.shape[0]
    Cout = w3_ref.shape[0]
    L = x_ref.shape[1]

    x = x_ref[...]                                   # (Cin, Lb), lane-dense f32

    b_all = b_ref[...]                               # (2P + Cout, 1) f32
    b1 = b_all[0:P]
    b2 = b_all[P:2 * P]
    b3 = b_all[2 * P:2 * P + Cout]

    masks = m_ref[...]                               # (9, Lb) f32, precomputed

    # --- conv1 (1x1) + bn1 (scale folded into w1) + relu ---
    h = jnp.dot(w1_ref[...], x.astype(jnp.bfloat16),
                preferred_element_type=jnp.float32)  # (P, Lb) f32 accum
    h = jnp.maximum(h + b1, 0.0)

    # --- conv2 (3x3, pad=1) + bn2 (folded) + relu : single im2col matmul ---
    # Patches via XLU lane rolls + precomputed 0/1 boundary masks. The masks
    # also kill any cross-image bleed when several images share the lane axis
    # (every block starts at an image boundary and Lb is a multiple of H*W).
    patches = []
    for di in range(3):
        for dj in range(3):
            k = di * 3 + dj
            s = (di - 1) * W + (dj - 1)              # flat source offset
            shifted = h if s == 0 else pltpu.roll(h, shift=(-s) % L, axis=1)
            patches.append(shifted * masks[k:k + 1, :])   # f32 elementwise
    patch = jnp.concatenate(patches, axis=0)              # (9P, Lb) f32
    h2 = jnp.dot(w2_ref[...], patch.astype(jnp.bfloat16),
                 preferred_element_type=jnp.float32)      # (P, Lb) f32
    h2 = jnp.maximum(h2 + b2, 0.0)

    # TODO(synk): TCA() definition not provided -> identity.

    # --- conv3 (1x1) + bn3 (folded) + relu ---
    h3 = jnp.dot(w3_ref[...], h2.astype(jnp.bfloat16),
                 preferred_element_type=jnp.float32)      # (Cout, Lb) f32
    h3 = jnp.maximum(h3 + b3, 0.0)

    # --- residual add (exact f32 x) + final relu (Cin == Cout) ---
    o_ref[...] = jnp.maximum(h3 + x, 0.0).astype(o_ref.dtype)


def _build_conv_masks(H, W, images_per_block):
    """(9, images_per_block*H*W) f32 0/1 validity masks for 3x3, pad=1."""
    HW = H * W
    pos = jnp.arange(HW, dtype=jnp.int32)
    row = pos // W
    col = pos % W
    rows = []
    for di in range(3):
        for dj in range(3):
            oh, ow = di - 1, dj - 1
            valid = ((row + oh >= 0) & (row + oh < H) &
                     (col + ow >= 0) & (col + ow < W))
            rows.append(valid)
    m = jnp.stack(rows, axis=0).astype(jnp.float32)       # (9, HW)
    return jnp.tile(m, (1, images_per_block))             # (9, Lb)


def bottleneck_forward(x_nchw, kern_params):
    """x_nchw: (N, Cin, H, W) float32. Returns (N, Cout, H, W) float32."""
    w1, w2, w3, biases = kern_params
    N, Cin, H, W = x_nchw.shape
    P = w1.shape[0]
    Cout = w3.shape[0]
    HW = H * W
    assert Cin == Cout, "stride=1 / downsample=None requires inplanes == planes*4"

    # Keep >=2 parallel blocks when the batch allows it (v7x has 2 TCs per
    # chip); v5e/v6e have a single TC so a 1-long grid would also be fine there.
    grid_n = 2 if (N % 2 == 0 and N >= 2) else 1
    nb = N // grid_n                       # images per grid step
    Lb = nb * HW                           # per-step lane width
    assert Lb % 128 == 0, "activation lane dim must stay 128-aligned (pad HW)"

    # One-time relayout to a lane-dense (C, N*HW) slab. All in-kernel loads and
    # stores are then unmasked full-lane vectors (no vst.msk partial stores).
    x2d = jnp.transpose(x_nchw, (1, 0, 2, 3)).reshape(Cin, N * HW)
    masks = _build_conv_masks(H, W, nb)

    out2d = pl.pallas_call(
        functools.partial(bottleneck_kernel, W=W),
        out_shape=jax.ShapeDtypeStruct((Cout, N * HW), jnp.float32),
        grid=(grid_n,),
        in_specs=[
            pl.BlockSpec((Cin, Lb), lambda b: (0, b)),
            pl.BlockSpec((P, Cin), lambda b: (0, 0)),          # constant index:
            pl.BlockSpec((P, 9 * P), lambda b: (0, 0)),        #   weights stay
            pl.BlockSpec((Cout, P), lambda b: (0, 0)),         #   resident
            pl.BlockSpec((2 * P + Cout, 1), lambda b: (0, 0)),
            pl.BlockSpec((9, Lb), lambda b: (0, 0)),
        ],
        out_specs=pl.BlockSpec((Cout, Lb), lambda b: (0, b)),
        compiler_params=pltpu.CompilerParams(
            dimension_semantics=("parallel",),
            vmem_limit_bytes=32 * 1024 * 1024),
    )(x2d, w1, w2, w3, biases, masks)

    return jnp.transpose(out2d.reshape(Cout, N, H, W), (1, 0, 2, 3))


def make_params(key, inplanes, planes):
    ext = 4
    cout = planes * ext
    ks = jax.random.split(key, 6)
    # PyTorch conv weight layouts:
    #   conv1: (P, Cin, 1, 1)   conv2: (P, P, 3, 3)   conv3: (4P, P, 1, 1)
    w1 = jax.random.normal(ks[0], (planes, inplanes, 1, 1), jnp.float32) * 0.1
    w2 = jax.random.normal(ks[1], (planes, planes, 3, 3), jnp.float32) * 0.1
    w3 = jax.random.normal(ks[2], (cout, planes, 1, 1), jnp.float32) * 0.1

    def bn_params(k, c):
        kk = jax.random.split(k, 4)
        gamma = 1.0 + 0.1 * jax.random.normal(kk[0], (c,), jnp.float32)
        beta = 0.1 * jax.random.normal(kk[1], (c,), jnp.float32)
        mean = 0.1 * jax.random.normal(kk[2], (c,), jnp.float32)
        var = jnp.abs(jax.random.normal(kk[3], (c,), jnp.float32)) + 0.5
        scale = gamma / jnp.sqrt(var + 1e-5)
        bias = beta - mean * scale
        return scale, bias

    s1, b1 = bn_params(ks[3], planes)
    s2, b2 = bn_params(ks[4], planes)
    s3, b3 = bn_params(ks[5], cout)

    # Kernel layouts: BN scale folded into conv weight rows (one-time fold),
    # then cast to bf16 (MXU-native on v6e/v7x); biases stay f32.
    #   w1k: (P, Cin)   w2k: (P, 9P), k-index = (di*3+dj)*P + c   w3k: (4P, P)
    w1k = (w1[:, :, 0, 0] * s1[:, None]).astype(jnp.bfloat16)
    w2k = (jnp.transpose(w2, (0, 2, 3, 1)).reshape(planes, 9 * planes)
           * s2[:, None]).astype(jnp.bfloat16)
    w3k = (w3[:, :, 0, 0] * s3[:, None]).astype(jnp.bfloat16)
    biases = jnp.concatenate([b1, b2, b3]).reshape(-1, 1)    # one small operand
    kern_params = (w1k, w2k, w3k, biases)

    # Reference layouts (HWIO, un-folded, f32) for an independent check.
    w1r = jnp.transpose(w1[:, :, 0, 0], (1, 0))[None, None]   # (1,1,Cin,P)
    w2r = jnp.transpose(w2, (2, 3, 1, 0))                     # (3,3,Pin,Pout)
    w3r = jnp.transpose(w3[:, :, 0, 0], (1, 0))[None, None]   # (1,1,P,Cout)
    ref_params = (w1r, s1, b1, w2r, s2, b2, w3r, s3, b3)
    return kern_params, ref_params


def reference_forward(x_nchw, ref_params):
    """Pure-JAX f32 reference (NHWC convs, un-folded BN) for correctness."""
    w1, s1, b1, w2, s2, b2, w3, s3, b3 = ref_params
    x = jnp.transpose(x_nchw, (0, 2, 3, 1))
    dn = ("NHWC", "HWIO", "NHWC")
    h = jax.lax.conv_general_dilated(x, w1, (1, 1), "VALID", dimension_numbers=dn)
    h = jnp.maximum(h * s1 + b1, 0.0)
    h = jax.lax.conv_general_dilated(h, w2, (1, 1), "SAME", dimension_numbers=dn)
    h = jnp.maximum(h * s2 + b2, 0.0)
    h = jax.lax.conv_general_dilated(h, w3, (1, 1), "VALID", dimension_numbers=dn)
    h = jnp.maximum(h * s3 + b3, 0.0)
    out = jnp.maximum(h + x, 0.0)
    return jnp.transpose(out, (0, 3, 1, 2))


if __name__ == "__main__":
    # stride=1, downsample=None  =>  inplanes must equal planes * 4
    N, planes, H, W = 2, 8, 16, 16
    inplanes = planes * 4  # 32

    key = jax.random.PRNGKey(0)
    kx, kp = jax.random.split(key)
    x = jax.random.normal(kx, (N, inplanes, H, W), jnp.float32)
    kern_params, ref_params = make_params(kp, inplanes, planes)

    out = bottleneck_forward(x, kern_params)
    out = jax.block_until_ready(out)

    ref = reference_forward(x, ref_params)
    assert out.shape == (N, inplanes, H, W)
    # Tolerance loosened vs the f32 reference because matmul operands are bf16
    # (accumulation stays f32); observed error is ~1e-2 absolute at worst here.
    assert jnp.allclose(out, ref, atol=3e-2, rtol=3e-2)

    print("KERNEL_OK")
</pallas_src>

<mosaic_0001>
module attributes {stable_mosaic.version = 11 : i64} {
  func.func @bottleneck_kernel(%arg0: i32, %arg1: memref<32x256xf32, #tpu.memory_space<vmem>>, %arg2: memref<8x32xbf16, #tpu.memory_space<vmem>>, %arg3: memref<8x72xbf16, #tpu.memory_space<vmem>>, %arg4: memref<32x8xbf16, #tpu.memory_space<vmem>>, %arg5: memref<48x1xf32, #tpu.memory_space<vmem>>, %arg6: memref<9x256xf32, #tpu.memory_space<vmem>>, %arg7: memref<32x256xf32, #tpu.memory_space<vmem>>) attributes {dimension_semantics = [#tpu.dimension_semantics<parallel>], iteration_bounds = array<i64: 2>, scalar_prefetch = 0 : i64, scratch_operands = 0 : i64, tpu.core_type = #tpu.core_type<tc>, window_params = [{transform_indices = @transform_0, window_bounds = array<i64: 32, 256>}, {pipeline_mode = #tpu.pipeline_mode<synchronous>, transform_indices = @transform_1, window_bounds = array<i64: 8, 32>}, {pipeline_mode = #tpu.pipeline_mode<synchronous>, transform_indices = @transform_2, window_bounds = array<i64: 8, 72>}, {pipeline_mode = #tpu.pipeline_mode<synchronous>, transform_indices = @transform_3, window_bounds = array<i64: 32, 8>}, {pipeline_mode = #tpu.pipeline_mode<synchronous>, transform_indices = @transform_4, window_bounds = array<i64: 48, 1>}, {pipeline_mode = #tpu.pipeline_mode<synchronous>, transform_indices = @transform_5, window_bounds = array<i64: 9, 256>}, {transform_indices = @transform_6, window_bounds = array<i64: 32, 256>}]} {
    %c0 = arith.constant 0 : index
    %c0_0 = arith.constant 0 : index
    %0 = vector.load %arg1[%c0, %c0_0] : memref<32x256xf32, #tpu.memory_space<vmem>>, vector<32x256xf32>
    %c0_1 = arith.constant 0 : index
    %c0_2 = arith.constant 0 : index
    %1 = vector.load %arg5[%c0_1, %c0_2] : memref<48x1xf32, #tpu.memory_space<vmem>>, vector<48x1xf32>
    %2 = vector.extract_strided_slice %1 {offsets = [0, 0], sizes = [8, 1], strides = [1, 1]} : vector<48x1xf32> to vector<8x1xf32>
    %3 = vector.extract_strided_slice %1 {offsets = [8, 0], sizes = [8, 1], strides = [1, 1]} : vector<48x1xf32> to vector<8x1xf32>
    %4 = vector.extract_strided_slice %1 {offsets = [16, 0], sizes = [32, 1], strides = [1, 1]} : vector<48x1xf32> to vector<32x1xf32>
    %c0_3 = arith.constant 0 : index
    %c0_4 = arith.constant 0 : index
    %5 = vector.load %arg6[%c0_3, %c0_4] : memref<9x256xf32, #tpu.memory_space<vmem>>, vector<9x256xf32>
    %c0_5 = arith.constant 0 : index
    %c0_6 = arith.constant 0 : index
    %6 = vector.load %arg2[%c0_5, %c0_6] : memref<8x32xbf16, #tpu.memory_space<vmem>>, vector<8x32xbf16>
    %7 = arith.truncf %0 : vector<32x256xf32> to vector<32x256xbf16>
    %cst = arith.constant dense<0.000000e+00> : vector<8x256xf32>
    %8 = tpu.matmul %6, %7, %cst {dimension_numbers = #tpu.dot_dimension_numbers<[1], [0], [0], [1], [0, 0, 1, 1], [], []>} : vector<8x32xbf16>, vector<32x256xbf16>, vector<8x256xf32> -> vector<8x256xf32>
    %9 = vector.broadcast %2 : vector<8x1xf32> to vector<8x256xf32>
    %10 = arith.addf %8, %9 : vector<8x256xf32>
    %cst_7 = arith.constant 0.000000e+00 : f32
    %11 = vector.broadcast %cst_7 : f32 to vector<8x256xf32>
    %12 = arith.maximumf %10, %11 : vector<8x256xf32>
    %c17_i32 = arith.constant 17 : i32
    %13 = tpu.dynamic_rotate %12 by %c17_i32 dim 1 : vector<8x256xf32>, i32 -> vector<8x256xf32>
    %14 = vector.extract_strided_slice %5 {offsets = [0, 0], sizes = [1, 256], strides = [1, 1]} : vector<9x256xf32> to vector<1x256xf32>
    %15 = vector.broadcast %14 : vector<1x256xf32> to vector<8x256xf32>
    %16 = arith.mulf %13, %15 : vector<8x256xf32>
    %c16_i32 = arith.constant 16 : i32
    %17 = tpu.dynamic_rotate %12 by %c16_i32 dim 1 : vector<8x256xf32>, i32 -> vector<8x256xf32>
    %18 = vector.extract_strided_slice %5 {offsets = [1, 0], sizes = [1, 256], strides = [1, 1]} : vector<9x256xf32> to vector<1x256xf32>
    %19 = vector.broadcast %18 : vector<1x256xf32> to vector<8x256xf32>
    %20 = arith.mulf %17, %19 : vector<8x256xf32>
    %c15_i32 = arith.constant 15 : i32
    %21 = tpu.dynamic_rotate %12 by %c15_i32 dim 1 : vector<8x256xf32>, i32 -> vector<8x256xf32>
    %22 = vector.extract_strided_slice %5 {offsets = [2, 0], sizes = [1, 256], strides = [1, 1]} : vector<9x256xf32> to vector<1x256xf32>
    %23 = vector.broadcast %22 : vector<1x256xf32> to vector<8x256xf32>
    %24 = arith.mulf %21, %23 : vector<8x256xf32>
    %c1_i32 = arith.constant 1 : i32
    %25 = tpu.dynamic_rotate %12 by %c1_i32 dim 1 : vector<8x256xf32>, i32 -> vector<8x256xf32>
    %26 = vector.extract_strided_slice %5 {offsets = [3, 0], sizes = [1, 256], strides = [1, 1]} : vector<9x256xf32> to vector<1x256xf32>
    %27 = vector.broadcast %26 : vector<1x256xf32> to vector<8x256xf32>
    %28 = arith.mulf %25, %27 : vector<8x256xf32>
    %29 = vector.extract_strided_slice %5 {offsets = [4, 0], sizes = [1, 256], strides = [1, 1]} : vector<9x256xf32> to vector<1x256xf32>
    %30 = vector.broadcast %29 : vector<1x256xf32> to vector<8x256xf32>
    %31 = arith.mulf %12, %30 : vector<8x256xf32>
    %c255_i32 = arith.constant 255 : i32
    %32 = tpu.dynamic_rotate %12 by %c255_i32 dim 1 : vector<8x256xf32>, i32 -> vector<8x256xf32>
    %33 = vector.extract_strided_slice %5 {offsets = [5, 0], sizes = [1, 256], strides = [1, 1]} : vector<9x256xf32> to vector<1x256xf32>
    %34 = vector.broadcast %33 : vector<1x256xf32> to vector<8x256xf32>
    %35 = arith.mulf %32, %34 : vector<8x256xf32>
    %c241_i32 = arith.constant 241 : i32
    %36 = tpu.dynamic_rotate %12 by %c241_i32 dim 1 : vector<8x256xf32>, i32 -> vector<8x256xf32>
    %37 = vector.extract_strided_slice %5 {offsets = [6, 0], sizes = [1, 256], strides = [1, 1]} : vector<9x256xf32> to vector<1x256xf32>
    %38 = vector.broadcast %37 : vector<1x256xf32> to vector<8x256xf32>
    %39 = arith.mulf %36, %38 : vector<8x256xf32>
    %c240_i32 = arith.constant 240 : i32
    %40 = tpu.dynamic_rotate %12 by %c240_i32 dim 1 : vector<8x256xf32>, i32 -> vector<8x256xf32>
    %41 = vector.extract_strided_slice %5 {offsets = [7, 0], sizes = [1, 256], strides = [1, 1]} : vector<9x256xf32> to vector<1x256xf32>
    %42 = vector.broadcast %41 : vector<1x256xf32> to vector<8x256xf32>
    %43 = arith.mulf %40, %42 : vector<8x256xf32>
    %c239_i32 = arith.constant 239 : i32
    %44 = tpu.dynamic_rotate %12 by %c239_i32 dim 1 : vector<8x256xf32>, i32 -> vector<8x256xf32>
    %45 = vector.extract_strided_slice %5 {offsets = [8, 0], sizes = [1, 256], strides = [1, 1]} : vector<9x256xf32> to vector<1x256xf32>
    %46 = vector.broadcast %45 : vector<1x256xf32> to vector<8x256xf32>
    %47 = arith.mulf %44, %46 : vector<8x256xf32>
    %48 = tpu.concatenate %16, %20, %24, %28, %31, %35, %39, %43, %47 in 0 : vector<8x256xf32>, vector<8x256xf32>, vector<8x256xf32>, vector<8x256xf32>, vector<8x256xf32>, vector<8x256xf32>, vector<8x256xf32>, vector<8x256xf32>, vector<8x256xf32> -> vector<72x256xf32>
    %c0_8 = arith.constant 0 : index
    %c0_9 = arith.constant 0 : index
    %49 = vector.load %arg3[%c0_8, %c0_9] : memref<8x72xbf16, #tpu.memory_space<vmem>>, vector<8x72xbf16>
    %50 = arith.truncf %48 : vector<72x256xf32> to vector<72x256xbf16>
    %cst_10 = arith.constant dense<0.000000e+00> : vector<8x256xf32>
    %51 = tpu.matmul %49, %50, %cst_10 {dimension_numbers = #tpu.dot_dimension_numbers<[1], [0], [0], [1], [0, 0, 1, 1], [], []>} : vector<8x72xbf16>, vector<72x256xbf16>, vector<8x256xf32> -> vector<8x256xf32>
    %52 = vector.broadcast %3 : vector<8x1xf32> to vector<8x256xf32>
    %53 = arith.addf %51, %52 : vector<8x256xf32>
    %cst_11 = arith.constant 0.000000e+00 : f32
    %54 = vector.broadcast %cst_11 : f32 to vector<8x256xf32>
    %55 = arith.maximumf %53, %54 : vector<8x256xf32>
    %c0_12 = arith.constant 0 : index
    %c0_13 = arith.constant 0 : index
    %56 = vector.load %arg4[%c0_12, %c0_13] : memref<32x8xbf16, #tpu.memory_space<vmem>>, vector<32x8xbf16>
    %57 = arith.truncf %55 : vector<8x256xf32> to vector<8x256xbf16>
    %cst_14 = arith.constant dense<0.000000e+00> : vector<32x256xf32>
    %58 = tpu.matmul %56, %57, %cst_14 {dimension_numbers = #tpu.dot_dimension_numbers<[1], [0], [0], [1], [0, 0, 1, 1], [], []>} : vector<32x8xbf16>, vector<8x256xbf16>, vector<32x256xf32> -> vector<32x256xf32>
    %59 = vector.broadcast %4 : vector<32x1xf32> to vector<32x256xf32>
    %60 = arith.addf %58, %59 : vector<32x256xf32>
    %cst_15 = arith.constant 0.000000e+00 : f32
    %61 = vector.broadcast %cst_15 : f32 to vector<32x256xf32>
    %62 = arith.maximumf %60, %61 : vector<32x256xf32>
    %63 = arith.addf %62, %0 : vector<32x256xf32>
    %cst_16 = arith.constant 0.000000e+00 : f32
    %64 = vector.broadcast %cst_16 : f32 to vector<32x256xf32>
    %65 = arith.maximumf %63, %64 : vector<32x256xf32>
    %c0_17 = arith.constant 0 : index
    %c0_18 = arith.constant 0 : index
    %66 = vector.load %arg7[%c0_17, %c0_18] : memref<32x256xf32, #tpu.memory_space<vmem>>, vector<32x256xf32>
    tpu.vector_store %arg7[%c0_17, %c0_18], %65 {strides = array<i32>} : memref<32x256xf32, #tpu.memory_space<vmem>>, vector<32x256xf32>,
    return
  }
  func.func @transform_0(%arg0: i32) -> (i32, i32) {
    %c0_i32 = arith.constant 0 : i32
    %c0_i32_0 = arith.constant 0 : i32
    return %c0_i32, %arg0 : i32, i32
  }
  func.func @transform_1(%arg0: i32) -> (i32, i32) {
    %c0_i32 = arith.constant 0 : i32
    %c0_i32_0 = arith.constant 0 : i32
    %c0_i32_1 = arith.constant 0 : i32
    return %c0_i32, %c0_i32_0 : i32, i32
  }
  func.func @transform_2(%arg0: i32) -> (i32, i32) {
    %c0_i32 = arith.constant 0 : i32
    %c0_i32_0 = arith.constant 0 : i32
    %c0_i32_1 = arith.constant 0 : i32
    return %c0_i32, %c0_i32_0 : i32, i32
  }
  func.func @transform_3(%arg0: i32) -> (i32, i32) {
    %c0_i32 = arith.constant 0 : i32
    %c0_i32_0 = arith.constant 0 : i32
    %c0_i32_1 = arith.constant 0 : i32
    return %c0_i32, %c0_i32_0 : i32, i32
  }
  func.func @transform_4(%arg0: i32) -> (i32, i32) {
    %c0_i32 = arith.constant 0 : i32
    %c0_i32_0 = arith.constant 0 : i32
    %c0_i32_1 = arith.constant 0 : i32
    return %c0_i32, %c0_i32_0 : i32, i32
  }
  func.func @transform_5(%arg0: i32) -> (i32, i32) {
    %c0_i32 = arith.constant 0 : i32
    %c0_i32_0 = arith.constant 0 : i32
    %c0_i32_1 = arith.constant 0 : i32
    return %c0_i32, %c0_i32_0 : i32, i32
  }
  func.func @transform_6(%arg0: i32) -> (i32, i32) {
    %c0_i32 = arith.constant 0 : i32
    %c0_i32_0 = arith.constant 0 : i32
    return %c0_i32, %arg0 : i32, i32
  }
}

</mosaic_0001>

<llo_original>
// kernel: tpu_custom_call.1
$region0: #{tpu_custom_call.1}
  #allocation0 [shape = 'u32[]', space=smem, size = 0x4, offset = 0x4, fixed_abs, tag = 'smem constant byte address 0x4 - core index']
  #allocation1 [shape = 'u32[72,128]{1,0:T(1,128)}', space=vmem, size = 0x9000, scoped, tag = 'internal scratch']
  %s0 = inlined_call_operand.hbm [shape: f32[32,512], index: 0, kind: input, shape index: {}]
  %s1 = inlined_call_operand.vmem [shape: bf16[8,32], index: 1, kind: input, shape index: {}]
  %s2 = inlined_call_operand.vmem [shape: bf16[8,72], index: 2, kind: input, shape index: {}]
  %s3 = inlined_call_operand.vmem [shape: bf16[32,8], index: 3, kind: input, shape index: {}]
  %s4 = inlined_call_operand.vmem [shape: f32[48,1], index: 4, kind: input, shape index: {}]
  %s5 = inlined_call_operand.vmem [shape: f32[9,256], index: 5, kind: input, shape index: {}]
  %s6 = inlined_call_operand.hbm [shape: f32[32,512], index: 6, kind: output, shape index: {}]
  %s7 = sld [smem:[#allocation0]]
  $region61: #{tpu_custom_call.1} parent=0
    _
  %s9 = ssub.s32 1, %s7
  %s10 = scalar_select 0, %s9, %s7
  $region1: #{tpu_custom_call.1} parent=0
    #allocation2 [shape = 'u8[65536]{0}', space=vmem, size = 0x10000, scoped, tag = 'input window, operand 0']
    #allocation3 [shape = 's32[2]{0}', space=sflag, size = 0x8, scoped, tag = 'scoped memory for tpu_custom_call.1']
    #allocation4 [shape = 's32[2]{0}', space=sflag, size = 0x8, scoped, tag = 'scoped memory for tpu_custom_call.1']
    #allocation5 [shape = 'u8[65536]{0}', space=vmem, size = 0x10000, scoped, tag = 'output window, operand 0']
    %11 = vsyncpa [#allocation3], 0
    %s12 = scalar_lea.sflag [#allocation3], 1
    %13 = vsyncpa %s12, 0
    %14 = vsyncpa [#allocation4], 0
    %s15 = scalar_lea.sflag [#allocation4], 1
    %16 = vsyncpa %s15, 0
    loop: start=0, step=1, limit=4
    $region2: #{tpu_custom_call.1} parent=1 // loop_pre_header
      _
    $region3: #{tpu_custom_call.1} parent=1 // loop_header
      %s18 = sphi 0, %s22
      %p19 = scmp.ge.s32.totalorder %s18, 4
      %s28 = sphi 0, %s30
      %s31 = sphi 0, %s28
      %s32 = sphi 0, %s31
      %s48 = sphi 0, %s32
      %s52 = sphi 0, %s52
      %s54 = sphi 0, %s52
      %s55 = sphi 0, %s54
      %s69 = sphi 0, %s55
      %s73 = sphi 0, %s73
      %s75 = sphi 0, %s73
      %s76 = sphi 0, %s75
      %s90 = sphi 0, %s76
      %s94 = sphi 0, %s94
      %s96 = sphi 0, %s94
      %s97 = sphi 0, %s96
      %s111 = sphi 0, %s97
      %s115 = sphi 0, %s115
      %s117 = sphi 0, %s115
      %s118 = sphi 0, %s117
      %s132 = sphi 0, %s118
      %s136 = sphi 0, %s136
      %s138 = sphi 0, %s136
      %s139 = sphi 0, %s138
      %s153 = sphi 0, %s139
      %s159 = sphi 0, %s161
      %s162 = sphi 0, %s159
      %s163 = sphi 0, %s162
      %s179 = sphi 0, %s163
    $region4: #{tpu_custom_call.1} parent=1 // loop_header_branch
      %21 = sbr.rel (%p19) target = $region8
    $region5: #{tpu_custom_call.1} parent=1 // loop_body
      %s23 = ssub.s32 %s18, 1
      %s24 = ssub.s32 %s18, 2
      %s25 = sadd.s32 %s18, 1
      %s26 = ssub.s32 %s18, %s25
      %p27 = scmp.eq.s32.totalorder %s26, 0
      %s29 = sadd.s32 %s28, 1
      %s30 = scalar_select %p27, %s28, %s29
      %p33 = pneg %p27
      %p34 = scmp.eq.s32.totalorder %s18, 1
      %p35 = por %p33, %p34
      %p36 = scmp.ne.s32.totalorder %s28, %s31
      %p37 = scmp.eq.s32.totalorder %s18, 0
      %p38 = por %p36, %p37
      %p39 = scmp.ne.s32.totalorder %s28, %s31
      %p40 = scmp.eq.s32.totalorder %s23, 1
      %p41 = por %p39, %p40
      %p42 = scmp.ne.s32.totalorder %s31, %s32
      %p43 = scmp.eq.s32.totalorder %s23, 0
      %p44 = por %p42, %p43
      %p45 = scmp.ne.s32.totalorder %s31, %s32
      %p46 = scmp.eq.s32.totalorder %s24, 1
      %p47 = por %p45, %p46
      %p49 = scmp.ne.s32.totalorder %s32, %s48
      %p50 = scmp.eq.s32.totalorder %s24, 0
      %p51 = por %p49, %p50
      %s53 = sadd.s32 %s52, 1
      %p56 = scmp.eq.s32.totalorder %s18, 1
      %p57 = scmp.ne.s32.totalorder %s52, %s54
      %p58 = scmp.eq.s32.totalorder %s18, 0
      %p59 = por %p57, %p58
      %p60 = scmp.ne.s32.totalorder %s52, %s54
      %p61 = scmp.eq.s32.totalorder %s23, 1
      %p62 = por %p60, %p61
      %p63 = scmp.ne.s32.totalorder %s54, %s55
      %p64 = scmp.eq.s32.totalorder %s23, 0
      %p65 = por %p63, %p64
      %p66 = scmp.ne.s32.totalorder %s54, %s55
      %p67 = scmp.eq.s32.totalorder %s24, 1
      %p68 = por %p66, %p67
      %p70 = scmp.ne.s32.totalorder %s55, %s69
      %p71 = scmp.eq.s32.totalorder %s24, 0
      %p72 = por %p70, %p71
      %s74 = sadd.s32 %s73, 1
      %p77 = scmp.eq.s32.totalorder %s18, 1
      %p78 = scmp.ne.s32.totalorder %s73, %s75
      %p79 = scmp.eq.s32.totalorder %s18, 0
      %p80 = por %p78, %p79
      %p81 = scmp.ne.s32.totalorder %s73, %s75
      %p82 = scmp.eq.s32.totalorder %s23, 1
      %p83 = por %p81, %p82
      %p84 = scmp.ne.s32.totalorder %s75, %s76
      %p85 = scmp.eq.s32.totalorder %s23, 0
      %p86 = por %p84, %p85
      %p87 = scmp.ne.s32.totalorder %s75, %s76
      %p88 = scmp.eq.s32.totalorder %s24, 1
      %p89 = por %p87, %p88
      %p91 = scmp.ne.s32.totalorder %s76, %s90
      %p92 = scmp.eq.s32.totalorder %s24, 0
      %p93 = por %p91, %p92
      %s95 = sadd.s32 %s94, 1
      %p98 = scmp.eq.s32.totalorder %s18, 1
      %p99 = scmp.ne.s32.totalorder %s94, %s96
      %p100 = scmp.eq.s32.totalorder %s18, 0
      %p101 = por %p99, %p100
      %p102 = scmp.ne.s32.totalorder %s94, %s96
      %p103 = scmp.eq.s32.totalorder %s23, 1
      %p104 = por %p102, %p103
      %p105 = scmp.ne.s32.totalorder %s96, %s97
      %p106 = scmp.eq.s32.totalorder %s23, 0
      %p107 = por %p105, %p106
      %p108 = scmp.ne.s32.totalorder %s96, %s97
      %p109 = scmp.eq.s32.totalorder %s24, 1
      %p110 = por %p108, %p109
      %p112 = scmp.ne.s32.totalorder %s97, %s111
      %p113 = scmp.eq.s32.totalorder %s24, 0
      %p114 = por %p112, %p113
      %s116 = sadd.s32 %s115, 1
      %p119 = scmp.eq.s32.totalorder %s18, 1
      %p120 = scmp.ne.s32.totalorder %s115, %s117
      %p121 = scmp.eq.s32.totalorder %s18, 0
      %p122 = por %p120, %p121
      %p123 = scmp.ne.s32.totalorder %s115, %s117
      %p124 = scmp.eq.s32.totalorder %s23, 1
      %p125 = por %p123, %p124
      %p126 = scmp.ne.s32.totalorder %s117, %s118
      %p127 = scmp.eq.s32.totalorder %s23, 0
      %p128 = por %p126, %p127
      %p129 = scmp.ne.s32.totalorder %s117, %s118
      %p130 = scmp.eq.s32.totalorder %s24, 1
      %p131 = por %p129, %p130
      %p133 = scmp.ne.s32.totalorder %s118, %s132
      %p134 = scmp.eq.s32.totalorder %s24, 0
      %p135 = por %p133, %p134
      %s137 = sadd.s32 %s136, 1
      %p140 = scmp.eq.s32.totalorder %s18, 1
      %p141 = scmp.ne.s32.totalorder %s136, %s138
      %p142 = scmp.eq.s32.totalorder %s18, 0
      %p143 = por %p141, %p142
      %p144 = scmp.ne.s32.totalorder %s136, %s138
      %p145 = scmp.eq.s32.totalorder %s23, 1
      %p146 = por %p144, %p145
      %p147 = scmp.ne.s32.totalorder %s138, %s139
      %p148 = scmp.eq.s32.totalorder %s23, 0
      %p149 = por %p147, %p148
      %p150 = scmp.ne.s32.totalorder %s138, %s139
      %p151 = scmp.eq.s32.totalorder %s24, 1
      %p152 = por %p150, %p151
      %p154 = scmp.ne.s32.totalorder %s139, %s153
      %p155 = scmp.eq.s32.totalorder %s24, 0
      %p156 = por %p154, %p155
      %s157 = ssub.s32 %s18, %s25
      %p158 = scmp.eq.s32.totalorder %s157, 0
      %s160 = sadd.s32 %s159, 1
      %s161 = scalar_select %p158, %s159, %s160
      %p164 = pneg %p158
      %p165 = scmp.eq.s32.totalorder %s18, 1
      %p166 = por %p164, %p165
      %p167 = scmp.ne.s32.totalorder %s159, %s162
      %p168 = scmp.eq.s32.totalorder %s18, 0
      %p169 = por %p167, %p168
      %p170 = scmp.ne.s32.totalorder %s159, %s162
      %p171 = scmp.eq.s32.totalorder %s23, 1
      %p172 = por %p170, %p171
      %p173 = scmp.ne.s32.totalorder %s162, %s163
      %p174 = scmp.eq.s32.totalorder %s23, 0
      %p175 = por %p173, %p174
      %p176 = scmp.ne.s32.totalorder %s162, %s163
      %p177 = scmp.eq.s32.totalorder %s24, 1
      %p178 = por %p176, %p177
      %p180 = scmp.ne.s32.totalorder %s163, %s179
      %p181 = scmp.eq.s32.totalorder %s24, 0
      %p182 = por %p180, %p181
      %p183 = scmp.le.s32.totalorder 1, %s18
      %p184 = scmp.lt.s32.totalorder %s18, 3
      %p185 = pnand %p183, %p184
      %p186 = pneg %p185
      // Predicated region
      $region9: #{tpu_custom_call.1} parent=5 // pred_check
        _
      $region10: #{tpu_custom_call.1} parent=5 // pred_check_branch
        %188 = sbr.rel (%p185) target = $region12
      $region11: #{tpu_custom_call.1} parent=5 // pred_region
        %s189 = ssub.s32 %s18, 1
        // Predicated region
        $region13: #{tpu_custom_call.1} parent=11 // pred_check
          %p190 = pneg %p65
        $region14: #{tpu_custom_call.1} parent=11 // pred_check_branch
          %192 = sbr.rel (%p190) target = $region16
        $region15: #{tpu_custom_call.1} parent=11 // pred_region
          _
        $region16: #{tpu_custom_call.1} parent=11 // pred_fallthru
          _
        // Predicated region
        $region17: #{tpu_custom_call.1} parent=11 // pred_check
          %p193 = pneg %p86
        $region18: #{tpu_custom_call.1} parent=11 // pred_check_branch
          %195 = sbr.rel (%p193) target = $region20
        $region19: #{tpu_custom_call.1} parent=11 // pred_region
          _
        $region20: #{tpu_custom_call.1} parent=11 // pred_fallthru
          _
        // Predicated region
        $region21: #{tpu_custom_call.1} parent=11 // pred_check
          %p196 = pneg %p107
        $region22: #{tpu_custom_call.1} parent=11 // pred_check_branch
          %198 = sbr.rel (%p196) target = $region24
        $region23: #{tpu_custom_call.1} parent=11 // pred_region
          _
        $region24: #{tpu_custom_call.1} parent=11 // pred_fallthru
          _
        // Predicated region
        $region25: #{tpu_custom_call.1} parent=11 // pred_check
          %p199 = pneg %p128
        $region26: #{tpu_custom_call.1} parent=11 // pred_check_branch
          %201 = sbr.rel (%p199) target = $region28
        $region27: #{tpu_custom_call.1} parent=11 // pred_region
          _
        $region28: #{tpu_custom_call.1} parent=11 // pred_fallthru
          _
        // Predicated region
        $region29: #{tpu_custom_call.1} parent=11 // pred_check
          %p202 = pneg %p149
        $region30: #{tpu_custom_call.1} parent=11 // pred_check_branch
          %204 = sbr.rel (%p202) target = $region32
        $region31: #{tpu_custom_call.1} parent=11 // pred_region
          _
        $region32: #{tpu_custom_call.1} parent=11 // pred_fallthru
          _
      $region12: #{tpu_custom_call.1} parent=5 // pred_fallthru
        _
      %p205 = scmp.lt.s32.totalorder %s18, 2
      // Predicated region
      $region33: #{tpu_custom_call.1} parent=5 // pred_check
        %p206 = pneg %p205
      $region34: #{tpu_custom_call.1} parent=5 // pred_check_branch
        %208 = sbr.rel (%p206) target = $region36
      $region35: #{tpu_custom_call.1} parent=5 // pred_region
        // Predicated region
        $region37: #{tpu_custom_call.1} parent=35 // pred_check
          %p209 = pneg %p38
        $region38: #{tpu_custom_call.1} parent=35 // pred_check_branch
          %211 = sbr.rel (%p209) target = $region40
        $region39: #{tpu_custom_call.1} parent=35 // pred_region
          %s212 = sand.u32 %s28, 1
          %s213 = scalar_lea.sflag [#allocation3], %s212
          %s214 = sand.u32 %s28, 1
          %s215 = smul.addr %s214, 64
          %s216 = scalar_lea.vmem [#allocation2], %s215
          %s217 = smul.u32 2, %s18
          %219 = vsyncadd %s213, 0
          %s220 = smul.addr %s217, 8
          %s221 = scalar_lea.hbm %s0, %s220
          %s222 = sshll.u32 %s221, 4
          %s223 = int_to_ptr.hbm [resolvable:$true] %s222
          %s224 = sshll.u32 %s216, 4
          %s225 = int_to_ptr.vmem [resolvable:$true] %s224
          %230 = dma.hbm_to_vmem [thread:$0]  %s223, 1024, %s225, %s213, 512, 256, 16
        $region40: #{tpu_custom_call.1} parent=35 // pred_fallthru
          _
      $region36: #{tpu_custom_call.1} parent=5 // pred_fallthru
        _
      %p231 = scmp.le.s32.totalorder 1, %s18
      %p232 = scmp.lt.s32.totalorder %s18, 3
      %p233 = pnand %p231, %p232
      %p234 = pneg %p233
      // Predicated region
      $region41: #{tpu_custom_call.1} parent=5 // pred_check
        _
      $region42: #{tpu_custom_call.1} parent=5 // pred_check_branch
        %236 = sbr.rel (%p233) target = $region44
      $region43: #{tpu_custom_call.1} parent=5 // pred_region
        %s237 = ssub.s32 %s18, 1
        %s238 = sand.u32 %s31, 1
        %s239 = scalar_lea.sflag [#allocation3], %s238
        %s240 = sand.u32 %s31, 1
        %s241 = smul.addr %s240, 64
        %s242 = scalar_lea.vmem [#allocation2], %s241
        // Predicated region
        $region45: #{tpu_custom_call.1} parent=43 // pred_check
          %p243 = pneg %p44
        $region46: #{tpu_custom_call.1} parent=43 // pred_check_branch
          %245 = sbr.rel (%p243) target = $region48
        $region47: #{tpu_custom_call.1} parent=43 // pred_region
          %247 = dma.done %s239, 1024
        $region48: #{tpu_custom_call.1} parent=43 // pred_fallthru
          _
        %s248 = sand.u32 %s31, 1
        %s249 = scalar_lea.sflag [#allocation3], %s248
        %s250 = sand.u32 %s31, 1
        %s251 = smul.addr %s250, 64
        %s252 = scalar_lea.vmem [#allocation2], %s251
        %p253 = pneg %p44
        %p254 = pneg %p41
        %p255 = pneg %p65
        %p256 = pneg %p62
        %p257 = pneg %p86
        %p258 = pneg %p83
        %p259 = pneg %p107
        %p260 = pneg %p104
        %p261 = pneg %p128
        %p262 = pneg %p125
        %p263 = pneg %p149
        %p264 = pneg %p146
        %p265 = pneg %p175
        %p266 = pneg %p172
        %s267 = sand.u32 %s162, 1
        %s268 = scalar_lea.sflag [#allocation4], %s267
        %s269 = sand.u32 %s162, 1
        %s270 = smul.addr %s269, 64
        %s271 = scalar_lea.vmem [#allocation5], %s270
        %s272 = smul.u32 2, %s23
        %s273 = smul.u32 2, %s23
        %v275 = vld [vmem:[%s242] sm:$0xff]
        %v276 = vld [vmem:[%s242 + $0x8] sm:$0xff]
        %v277 = vld [vmem:[%s242 + $0x10] sm:$0xff]
        %v278 = vld [vmem:[%s242 + $0x18] sm:$0xff]
        %v279 = vld [vmem:[%s242 + $0x20] sm:$0xff]
        %v280 = vld [vmem:[%s242 + $0x28] sm:$0xff]
        %v281 = vld [vmem:[%s242 + $0x30] sm:$0xff]
        %v282 = vld [vmem:[%s242 + $0x38] sm:$0xff]
        %v283 = vld [vmem:[%s4] sm:$0xff]
        %v284 = vld [vmem:[%s4 + $0x8] sm:$0xff]
        %v285 = vld [vmem:[%s4 + $0x10] sm:$0xff]
        %v286 = vld [vmem:[%s4 + $0x18] sm:$0xff]
        %v287 = vld [vmem:[%s4 + $0x20] sm:$0xff]
        %v288 = vld [vmem:[%s4 + $0x28] sm:$0xff]
        %v289 = vld [vmem:[%s5] sm:$0xff]
        %v290 = vld [vmem:[%s5 + $0x8] sm:$0xff]
        %v291 = vld [vmem:[%s5 + $0x10] sm:$0x1]
        %v292 = vld [vmem:[%s5 + $0x18] sm:$0x1]
        %v293 = vld [vmem:[%s1] sm:$0xf]
        %v294 = vpack.c.bf16 %v277, %v275
        %v295 = vpack.c.bf16 %v278, %v276
        %v296 = vpack.c.bf16 %v281, %v279
        %v297 = vpack.c.bf16 %v282, %v280
        %299 = vset.pattern.permute.xlu0 0
        %300 = vperm.xlu0 %299, %v283
        %v301 = vpop.permute.xlu0 %300
        %vm303 = vcmask 261120
        %v305 = vsel %vm303, %v293, 0
        %307 = vmatpush.bf16.msra.mxu0 0
        %308 = vmatpush.bf16.msra.mxu0 0
        %309 = vmatpush.bf16.msra.mxu0 0
        %310 = vmatpush.bf16.msra.mxu0 0
        %311 = vmatpush.bf16.msra.mxu0 0
        %312 = vmatpush.bf16.msra.mxu0 0
        %313 = vmatpush.bf16.msra.mxu0 %v296
        %314 = vmatpush.bf16.msra.mxu0 %v294
        %315 = vmatmul.bf16.gmra.mxu0 %v305
        %v316 = vpop.f32.mrf.mxu0
        %v317 = vadd.f32 %v301, %v316
        %v318 = vpop.f32.mrf.mxu0
        %319 = vdwg.mxu0
        %320 = vmatpush.bf16.msra.mxu0 0
        %321 = vmatpush.bf16.msra.mxu0 0
        %322 = vmatpush.bf16.msra.mxu0 0
        %323 = vmatpush.bf16.msra.mxu0 0
        %324 = vmatpush.bf16.msra.mxu0 0
        %325 = vmatpush.bf16.msra.mxu0 0
        %326 = vmatpush.bf16.msra.mxu0 %v297
        %327 = vmatpush.bf16.msra.mxu0 %v295
        %328 = vmatmul.bf16.gmra.mxu0 %v305
        %v329 = vpop.f32.mrf.mxu0
        %v330 = vadd.f32 %v301, %v329
        %v331 = vpop.f32.mrf.mxu0
        %332 = vdwg.mxu0
        %v333 = vmax.f32 %v317, 0.0
        %v334 = vmax.f32 %v330, 0.0
        %335 = vrot.lane.b32.xlu0 %v333, 17
        %v336 = vpop.permute.xlu0 %335
        %337 = vrot.lane.b32.xlu0 %v334, 17
        %v338 = vpop.permute.xlu0 %337
        %v339 = vlaneseq
        %v340 = vand.u32 %v339, 127
        %vm341 = vcmp.lt.s32.totalorder %v340, 17
        %v342 = vsel %vm341, %v336, %v338
        %v343 = vsel %vm341, %v338, %v336
        %v344 = vperm.slane %v289, 0
        %v345 = vperm.slane %v290, 0
        %v346 = vmul.f32 %v343, %v344
        %v347 = vmul.f32 %v342, %v345
        %348 = vrot.lane.b32.xlu0 %v333, 16
        %v349 = vpop.permute.xlu0 %348
        %350 = vrot.lane.b32.xlu0 %v334, 16
        %v351 = vpop.permute.xlu0 %350
        %vm352 = vcmp.lt.s32.totalorder %v340, 16
        %v353 = vsel %vm352, %v349, %v351
        %v354 = vsel %vm352, %v351, %v349
        %v355 = vperm.slane %v289, 1
        %v356 = vperm.slane %v290, 1
        %v357 = vmul.f32 %v354, %v355
        %v358 = vmul.f32 %v353, %v356
        %359 = vrot.lane.b32.xlu0 %v333, 15
        %v360 = vpop.permute.xlu0 %359
        %361 = vrot.lane.b32.xlu0 %v334, 15
        %v362 = vpop.permute.xlu0 %361
        %vm363 = vcmp.lt.s32.totalorder %v340, 15
        %v364 = vsel %vm363, %v360, %v362
        %v365 = vsel %vm363, %v362, %v360
        %v366 = vperm.slane %v289, 2
        %v367 = vperm.slane %v290, 2
        %v368 = vmul.f32 %v365, %v366
        %v369 = vmul.f32 %v364, %v367
        %370 = vrot.lane.b32.xlu0 %v333, 1
        %v371 = vpop.permute.xlu0 %370
        %372 = vrot.lane.b32.xlu0 %v334, 1
        %v373 = vpop.permute.xlu0 %372
        %vm374 = vcmp.lt.s32.totalorder %v340, 1
        %v375 = vsel %vm374, %v371, %v373
        %v376 = vsel %vm374, %v373, %v371
        %v377 = vperm.slane %v289, 3
        %v378 = vperm.slane %v290, 3
        %v379 = vmul.f32 %v376, %v377
        %v380 = vmul.f32 %v375, %v378
        %v381 = vperm.slane %v289, 4
        %v382 = vperm.slane %v290, 4
        %v383 = vmul.f32 %v333, %v381
        %v384 = vmul.f32 %v334, %v382
        %385 = vrot.lane.b32.xlu0 %v333, 127
        %v386 = vpop.permute.xlu0 %385
        %387 = vrot.lane.b32.xlu0 %v334, 127
        %v388 = vpop.permute.xlu0 %387
        %vm389 = vcmp.lt.s32.totalorder %v340, 127
        %v390 = vsel %vm389, %v386, %v388
        %v391 = vsel %vm389, %v388, %v386
        %v392 = vperm.slane %v289, 5
        %v393 = vperm.slane %v290, 5
        %v394 = vmul.f32 %v390, %v392
        %v395 = vmul.f32 %v391, %v393
        %396 = vrot.lane.b32.xlu0 %v333, 113
        %v397 = vpop.permute.xlu0 %396
        %398 = vrot.lane.b32.xlu0 %v334, 113
        %v399 = vpop.permute.xlu0 %398
        %vm400 = vcmp.lt.s32.totalorder %v340, 113
        %v401 = vsel %vm400, %v397, %v399
        %v402 = vsel %vm400, %v399, %v397
        %v403 = vperm.slane %v289, 6
        %v404 = vperm.slane %v290, 6
        %v405 = vmul.f32 %v401, %v403
        %v406 = vmul.f32 %v402, %v404
        %407 = vrot.lane.b32.xlu0 %v333, 112
        %v408 = vpop.permute.xlu0 %407
        %409 = vrot.lane.b32.xlu0 %v334, 112
        %v410 = vpop.permute.xlu0 %409
        %vm411 = vcmp.lt.s32.totalorder %v340, 112
        %v412 = vsel %vm411, %v408, %v410
        %v413 = vsel %vm411, %v410, %v408
        %v414 = vperm.slane %v289, 7
        %v415 = vperm.slane %v290, 7
        %v416 = vmul.f32 %v412, %v414
        %v417 = vmul.f32 %v413, %v415
        %418 = vrot.lane.b32.xlu0 %v333, 111
        %v419 = vpop.permute.xlu0 %418
        %420 = vrot.lane.b32.xlu0 %v334, 111
        %v421 = vpop.permute.xlu0 %420
        %vm422 = vcmp.lt.s32.totalorder %v340, 111
        %v423 = vsel %vm422, %v419, %v421
        %v424 = vsel %vm422, %v421, %v419
        %v425 = vperm.slane %v291, 0
        %v426 = vperm.slane %v292, 0
        %v427 = vmul.f32 %v423, %v425
        %v428 = vmul.f32 %v424, %v426
        %v429 = vld [vmem:[%s2] sm:$0xf]
        %v430 = vpack.c.bf16 %v357, %v346
        %v431 = vpack.c.bf16 %v358, %v347
        %v432 = vpack.c.bf16 %v379, %v368
        %v433 = vpack.c.bf16 %v380, %v369
        %v434 = vpack.c.bf16 %v394, %v383
        %v435 = vpack.c.bf16 %v395, %v384
        %v436 = vpack.c.bf16 %v416, %v405
        %v437 = vpack.c.bf16 %v417, %v406
        %v438 = vpack.c.bf16 %v427, %v427
        %v439 = vpack.c.bf16 %v428, %v428
        %441 = vset.pattern.permute.xlu0 0
        %442 = vperm.xlu0 %441, %v284
        %v443 = vpop.permute.xlu0 %442
        %vm445 = vcmask 588800
        %v447 = vsel %vm445, %v429, 0
        %vm449 = vcmask 1043456
        %v451 = vsel %vm449, %v438, 0
        %v454 = vsel %vm449, %v439, 0
        %456 = vmatpush.bf16.msra.mxu0 0
        %457 = vmatpush.bf16.msra.mxu0 0
        %458 = vmatpush.bf16.msra.mxu0 0
        %459 = vmatpush.bf16.msra.mxu0 %v451
        %460 = vmatpush.bf16.msra.mxu0 %v436
        %461 = vmatpush.bf16.msra.mxu0 %v434
        %462 = vmatpush.bf16.msra.mxu0 %v432
        %463 = vmatpush.bf16.msra.mxu0 %v430
        %464 = vmatmul.bf16.gmra.mxu0 %v447
        %v465 = vpop.f32.mrf.mxu0
        %v466 = vadd.f32 %v443, %v465
        %v467 = vpop.f32.mrf.mxu0
        %468 = vdwg.mxu0
        %469 = vmatpush.bf16.msra.mxu0 0
        %470 = vmatpush.bf16.msra.mxu0 0
        %471 = vmatpush.bf16.msra.mxu0 0
        %472 = vmatpush.bf16.msra.mxu0 %v454
        %473 = vmatpush.bf16.msra.mxu0 %v437
        %474 = vmatpush.bf16.msra.mxu0 %v435
        %475 = vmatpush.bf16.msra.mxu0 %v433
        %476 = vmatpush.bf16.msra.mxu0 %v431
        %477 = vmatmul.bf16.gmra.mxu0 %v447
        %v478 = vpop.f32.mrf.mxu0
        %v479 = vadd.f32 %v443, %v478
        %v480 = vpop.f32.mrf.mxu0
        %481 = vdwg.mxu0
        %v482 = vmax.f32 %v466, 0.0
        %v483 = vmax.f32 %v479, 0.0
        %v484 = vld [vmem:[%s3] sm:$0xf]
        %v485 = vld [vmem:[%s3 + $0x4] sm:$0xf]
        %v486 = vld [vmem:[%s3 + $0x8] sm:$0xf]
        %v487 = vld [vmem:[%s3 + $0xc] sm:$0xf]
        %v488 = vpack.c.bf16 %v482, %v482
        %v489 = vpack.c.bf16 %v483, %v483
        %491 = vset.pattern.permute.xlu0 0
        %492 = vperm.xlu0 %491, %v285
        %v493 = vpop.permute.xlu0 %492
        %496 = vset.pattern.permute.xlu0 0
        %497 = vperm.xlu0 %496, %v286
        %v498 = vpop.permute.xlu0 %497
        %501 = vset.pattern.permute.xlu0 0
        %502 = vperm.xlu0 %501, %v287
        %v503 = vpop.permute.xlu0 %502
        %506 = vset.pattern.permute.xlu0 0
        %507 = vperm.xlu0 %506, %v288
        %v508 = vpop.permute.xlu0 %507
        %v514 = vunpack.c.l.b16 %v484
        %v515 = vunpack.c.l.b16 %v485
        %v516 = vunpack.c.l.b16 %v486
        %v517 = vunpack.c.l.b16 %v487
        %v518 = vpack.c.b16 %v515, %v514
        %v519 = vpack.c.b16 %v517, %v516
        %vm520 = vcmask 64512
        %v522 = vsel %vm520, %v518, 0
        %v525 = vsel %vm520, %v519, 0
        %v528 = vsel %vm449, %v488, 0
        %v531 = vsel %vm449, %v489, 0
        %533 = vmatpush.bf16.msra.mxu0 0
        %534 = vmatpush.bf16.msra.mxu0 0
        %535 = vmatpush.bf16.msra.mxu0 0
        %536 = vmatpush.bf16.msra.mxu0 0
        %537 = vmatpush.bf16.msra.mxu0 0
        %538 = vmatpush.bf16.msra.mxu0 0
        %539 = vmatpush.bf16.msra.mxu0 0
        %540 = vmatpush.bf16.msra.mxu0 %v528
        %541 = vmatmul.bf16.gmra.mxu0 %v522
        %v542 = vpop.f32.mrf.mxu0
        %v543 = vadd.f32 %v493, %v542
        %v544 = vpop.f32.mrf.mxu0
        %v545 = vadd.f32 %v498, %v544
        %546 = vmatmul.bf16.gmra.mxu0 %v525
        %v547 = vpop.f32.mrf.mxu0
        %v548 = vadd.f32 %v503, %v547
        %v549 = vpop.f32.mrf.mxu0
        %v550 = vadd.f32 %v508, %v549
        %551 = vdwg.mxu0
        %552 = vmatpush.bf16.msra.mxu0 0
        %553 = vmatpush.bf16.msra.mxu0 0
        %554 = vmatpush.bf16.msra.mxu0 0
        %555 = vmatpush.bf16.msra.mxu0 0
        %556 = vmatpush.bf16.msra.mxu0 0
        %557 = vmatpush.bf16.msra.mxu0 0
        %558 = vmatpush.bf16.msra.mxu0 0
        %559 = vmatpush.bf16.msra.mxu0 %v531
        %560 = vmatmul.bf16.gmra.mxu0 %v522
        %v561 = vpop.f32.mrf.mxu0
        %v562 = vadd.f32 %v493, %v561
        %v563 = vpop.f32.mrf.mxu0
        %v564 = vadd.f32 %v498, %v563
        %565 = vmatmul.bf16.gmra.mxu0 %v525
        %v566 = vpop.f32.mrf.mxu0
        %v567 = vadd.f32 %v503, %v566
        %v568 = vpop.f32.mrf.mxu0
        %v569 = vadd.f32 %v508, %v568
        %570 = vdwg.mxu0
        %v571 = vmax.f32 %v543, 0.0
        %v572 = vmax.f32 %v562, 0.0
        %v573 = vmax.f32 %v545, 0.0
        %v574 = vmax.f32 %v564, 0.0
        %v575 = vmax.f32 %v548, 0.0
        %v576 = vmax.f32 %v567, 0.0
        %v577 = vmax.f32 %v550, 0.0
        %v578 = vmax.f32 %v569, 0.0
        %v579 = vadd.f32 %v571, %v275
        %v580 = vadd.f32 %v572, %v276
        %v581 = vadd.f32 %v573, %v277
        %v582 = vadd.f32 %v574, %v278
        %v583 = vadd.f32 %v575, %v279
        %v584 = vadd.f32 %v576, %v280
        %v585 = vadd.f32 %v577, %v281
        %v586 = vadd.f32 %v578, %v282
        %v587 = vmax.f32 %v579, 0.0
        %v588 = vmax.f32 %v580, 0.0
        %v589 = vmax.f32 %v581, 0.0
        %v590 = vmax.f32 %v582, 0.0
        %v591 = vmax.f32 %v583, 0.0
        %v592 = vmax.f32 %v584, 0.0
        %v593 = vmax.f32 %v585, 0.0
        %v594 = vmax.f32 %v586, 0.0
        %595 = vst [vmem:[%s271] sm:$0xff] %v587
        %596 = vst [vmem:[%s271 + $0x8] sm:$0xff] %v588
        %597 = vst [vmem:[%s271 + $0x10] sm:$0xff] %v589
        %598 = vst [vmem:[%s271 + $0x18] sm:$0xff] %v590
        %599 = vst [vmem:[%s271 + $0x20] sm:$0xff] %v591
        %600 = vst [vmem:[%s271 + $0x28] sm:$0xff] %v592
        %601 = vst [vmem:[%s271 + $0x30] sm:$0xff] %v593
        %602 = vst [vmem:[%s271 + $0x38] sm:$0xff] %v594
        %s603 = sand.u32 %s162, 1
        %s604 = scalar_lea.sflag [#allocation4], %s603
        %s605 = sand.u32 %s162, 1
        %s606 = smul.addr %s605, 64
        %s607 = scalar_lea.vmem [#allocation5], %s606
        // Predicated region
        $region49: #{tpu_custom_call.1} parent=43 // pred_check
          %p608 = pneg %p172
        $region50: #{tpu_custom_call.1} parent=43 // pred_check_branch
          %610 = sbr.rel (%p608) target = $region52
        $region51: #{tpu_custom_call.1} parent=43 // pred_region
          %s611 = smul.u32 2, %s23
          %613 = vsyncadd %s604, 0
          %s614 = smul.addr %s611, 8
          %s615 = scalar_lea.hbm %s6, %s614
          %s616 = sshll.u32 %s607, 4
          %s617 = int_to_ptr.vmem [resolvable:$true] %s616
          %s618 = sshll.u32 %s615, 4
          %s619 = int_to_ptr.hbm [resolvable:$true] %s618
          %624 = dma.vmem_to_hbm [thread:$0]  %s617, 1024, %s619, %s604, 256, 512, 16
        $region52: #{tpu_custom_call.1} parent=43 // pred_fallthru
          _
      $region44: #{tpu_custom_call.1} parent=5 // pred_fallthru
        _
      %p625 = scmp.le.s32.totalorder 2, %s18
      // Predicated region
      $region53: #{tpu_custom_call.1} parent=5 // pred_check
        %p626 = pneg %p625
      $region54: #{tpu_custom_call.1} parent=5 // pred_check_branch
        %628 = sbr.rel (%p626) target = $region56
      $region55: #{tpu_custom_call.1} parent=5 // pred_region
        %s629 = ssub.s32 %s18, 2
        // Predicated region
        $region57: #{tpu_custom_call.1} parent=55 // pred_check
          %p630 = pneg %p178
        $region58: #{tpu_custom_call.1} parent=55 // pred_check_branch
          %632 = sbr.rel (%p630) target = $region60
        $region59: #{tpu_custom_call.1} parent=55 // pred_region
          %s633 = sand.u32 %s163, 1
          %s634 = scalar_lea.sflag [#allocation4], %s633
          %s635 = sand.u32 %s163, 1
          %s636 = smul.addr %s635, 64
          %s637 = scalar_lea.vmem [#allocation5], %s636
          %639 = dma.done %s634, 1024
        $region60: #{tpu_custom_call.1} parent=55 // pred_fallthru
          _
      $region56: #{tpu_custom_call.1} parent=5 // pred_fallthru
        _
    $region6: #{tpu_custom_call.1} parent=1 // loop_footer
      %s22 = sadd.s32 1, %s18
    $region7: #{tpu_custom_call.1} parent=1 // loop_footer_branch
      %17 = sbr.rel target = $region3
    $region8: #{tpu_custom_call.1} parent=1 // loop_exit
      _
    %640 = vsyncpa [#allocation3], 1
    %s641 = scalar_lea.sflag [#allocation3], 1
    %642 = vsyncpa %s641, 1
    %643 = vsyncpa [#allocation4], 1
    %s644 = scalar_lea.sflag [#allocation4], 1
    %645 = vsyncpa %s644, 1

</llo_original>
